<compile_context>
chip_gen: v7x
topology: tpu7x:2x2x1
jax: 0.10.0
libtpu: 0.0.40
codegen_flags: <defaults>
</compile_context>

<pallas_src>
import functools

import jax
import jax.numpy as jnp
from jax import lax
from jax.experimental import pallas as pl
from jax.experimental.pallas import tpu as pltpu

LN_EPS = 1e-5
LEAKY_SLOPE = 0.01   # nn.LeakyReLU default negative_slope


def _round_up(a, b):
    return ((a + b - 1) // b) * b


def _cdiv(a, b):
    return (a + b - 1) // b


def _state_embedding_kernel(x_ref, wbig_ref, bp_ref, o_ref, *, sub):
    # x_ref:    (TM, L*F)    lane-dense rows, one (n, b) pair per row
    # wbig_ref: (L*F, L*D)   block-diagonal, gamma-folded linear weight (resident)
    # bp_ref:   (1, L*D)     folded additive term (beta + pos) @ W + b (resident)
    # o_ref:    (L, TM, D)   output block already in the final (L, N*B, D) layout
    L, TM, D = o_ref.shape
    n_chunks = TM // sub

    def body(c, carry):
        r0 = pl.multiple_of(c * sub, sub)
        x = x_ref[pl.ds(r0, sub), :]                                  # (sub, L*F) f32

        # nn.LayerNorm([L, F]): biased mean/var over all L*F elements of a row.
        mean = jnp.mean(x, axis=-1, keepdims=True)                    # (sub, 1)
        xc = x - mean
        var = jnp.mean(xc * xc, axis=-1, keepdims=True)               # (sub, 1)
        xs = xc * lax.rsqrt(var + LN_EPS)                             # gamma folded into wbig

        # Single block-diagonal matmul: (sub, L*F) @ (L*F, L*D) on the MXU.
        z = jnp.dot(xs, wbig_ref[...], preferred_element_type=jnp.float32)
        z = z + bp_ref[...]                                           # (1, L*D) broadcast
        z = jnp.where(z >= 0.0, z, LEAKY_SLOPE * z)                   # LeakyReLU

        for l in range(L):  # static unroll; lane-slice + masked D-lane store
            o_ref[l, pl.ds(r0, sub), :] = z[:, l * D:(l + 1) * D].astype(o_ref.dtype)
        return carry

    lax.fori_loop(0, n_chunks, body, 0, unroll=True)


@functools.partial(jax.jit, static_argnames=("tm",))
def state_embedding(x, gamma, beta, pos_enc, w, b, *, tm=1024):
    """x: (B, N, L, F) f32 -> out: (L, N*B, D) f32  (== torch StateEmbedding.forward)."""
    B, N, L, F = x.shape
    D = w.shape[1]
    LF = L * F
    LD = L * D
    M = N * B

    # ---- tiling: >=2 grid steps, even count (v7x has 2 TCs), even split of M
    # so padding never nearly doubles M; TM a multiple of the in-kernel
    # row-chunk SUB so the fori_loop divides evenly.
    n_steps = max(2, _cdiv(M, tm))
    if n_steps % 2:
        n_steps += 1
    quantum = 256 if M >= 512 else 8
    TM = _round_up(_cdiv(M, n_steps), quantum)
    SUB = min(TM, 256)
    M_pad = n_steps * TM

    # ---- operand prep (one-time XLA work) ----------------------------------
    # Reorder leading dims to n*B+b so the kernel writes the final (L, N*B, D)
    # layout directly. This costs one read+write of the *smaller* input.
    # TODO(synk): accept x pre-laid-out as (N, B, L, F) to drop this transpose.
    x_rows = jnp.transpose(x, (1, 0, 2, 3)).reshape(M, LF)
    if M_pad != M:
        # Zero pad rows -> var=0 -> rsqrt(eps) finite; rows sliced off below.
        x_rows = jnp.pad(x_rows, ((0, M_pad - M), (0, 0)))

    # Block-diagonal, gamma-folded weight:
    #   wbig[l*F + f, l*D + d] = gamma[l, f] * w[f, d]
    wbig = jnp.zeros((LF, LD), dtype=jnp.float32)
    for l in range(L):
        wbig = wbig.at[l * F:(l + 1) * F, l * D:(l + 1) * D].set(w)
    wbig = wbig * gamma.reshape(LF, 1)

    # Fold beta + positional encoding + linear bias:
    #   (xhat*gamma + beta + pos) @ W + b = xhat @ (diag(gamma) W) + [(beta+pos) @ W + b]
    bp = (jnp.dot(beta + pos_enc, w, precision=lax.Precision.HIGHEST)
          + b[None, :]).reshape(1, LD)

    kernel = functools.partial(_state_embedding_kernel, sub=SUB)
    out = pl.pallas_call(
        kernel,
        out_shape=jax.ShapeDtypeStruct((L, M_pad, D), jnp.float32),
        grid_spec=pltpu.PrefetchScalarGridSpec(
            num_scalar_prefetch=0,
            grid=(n_steps,),
            in_specs=[
                pl.BlockSpec((TM, LF), lambda i: (i, 0)),      # x rows (tiled over M)
                pl.BlockSpec((LF, LD), lambda i: (0, 0)),      # block-diag weight (resident)
                pl.BlockSpec((1, LD), lambda i: (0, 0)),       # folded bias (resident)
            ],
            out_specs=pl.BlockSpec((L, TM, D), lambda i: (0, i, 0)),
        ),
        compiler_params=pltpu.CompilerParams(
            dimension_semantics=("parallel",),   # shards the M axis across v7x's 2 TCs
            vmem_limit_bytes=32 * 1024 * 1024,
        ),
    )(x_rows, wbig, bp)

    if M_pad != M:
        out = out[:, :M, :]
    return out


def make_positional_encoding(d_model, max_len):
    # d_model must be even (matches the torch PositionalEncoding construction).
    assert d_model % 2 == 0, "PositionalEncoding assumes even d_model"
    pos = jnp.arange(max_len, dtype=jnp.float32)[:, None]               # (L, 1)
    _2i = jnp.arange(0, d_model, 2, dtype=jnp.float32)                  # (d_model/2,)
    angle = pos / jnp.power(10000.0, _2i / d_model)                     # (L, d_model/2)
    enc = jnp.zeros((max_len, d_model), dtype=jnp.float32)
    enc = enc.at[:, 0::2].set(jnp.sin(angle))
    enc = enc.at[:, 1::2].set(jnp.cos(angle))
    return enc


def state_embedding_ref(x, gamma, beta, pos_enc, w, b):
    """Pure-JAX fp32 reference of the torch module for verification."""
    B, N, L, F = x.shape
    D = w.shape[1]
    mean = jnp.mean(x, axis=(-2, -1), keepdims=True)
    var = jnp.mean((x - mean) ** 2, axis=(-2, -1), keepdims=True)
    xn = (x - mean) / jnp.sqrt(var + LN_EPS) * gamma + beta
    xp = xn + pos_enc
    y = jnp.einsum("bnlf,fd->bnld", xp, w,
                   precision=jax.lax.Precision.HIGHEST) + b
    y = jnp.where(y >= 0.0, y, LEAKY_SLOPE * y)
    return jnp.transpose(y, (2, 1, 0, 3)).reshape(L, N * B, D)


if __name__ == "__main__":
    # Shapes consistent with the module's forward: x (B, N, L, F)
    B, N, L, F, D = 2, 3, 8, 16, 32   # time_quantum=L, in_features=F, out_features=D, n_stock=N

    key = jax.random.PRNGKey(0)
    kx, kg, kb, kw, kbias = jax.random.split(key, 5)

    x = jax.random.normal(kx, (B, N, L, F), dtype=jnp.float32)

    # Deterministic synthetic parameters (shapes from StateEmbedding.__init__);
    # w is stored as (F, D), i.e. torch's linear weight transposed.
    gamma = 1.0 + 0.1 * jax.random.normal(kg, (L, F), dtype=jnp.float32)   # LayerNorm weight
    beta = 0.1 * jax.random.normal(kb, (L, F), dtype=jnp.float32)          # LayerNorm bias
    w = jax.random.normal(kw, (F, D), dtype=jnp.float32) / jnp.sqrt(F)     # Linear weight (F, D)
    b = 0.1 * jax.random.normal(kbias, (D,), dtype=jnp.float32)            # Linear bias
    pos_enc = make_positional_encoding(F, L)                               # PositionalEncoding(F, L)

    out = jax.block_until_ready(state_embedding(x, gamma, beta, pos_enc, w, b))
    assert out.shape == (L, N * B, D), out.shape

    ref = jax.block_until_ready(state_embedding_ref(x, gamma, beta, pos_enc, w, b))
    abs_err = jnp.abs(out - ref)
    max_err = float(jnp.max(abs_err))
    mean_err = float(jnp.mean(abs_err))
    # Tolerances account for single-pass bf16 MXU matmul at default precision
    # (per perf review); real bugs show up as O(0.1-1) errors.
    assert max_err < 2e-2, f"max abs error too large: {max_err}"
    assert mean_err < 2e-3, f"mean abs error too large: {mean_err}"

    print("KERNEL_OK")
</pallas_src>

<mosaic_0001>
module attributes {stable_mosaic.version = 11 : i64} {
  func.func @_state_embedding_kernel(%arg0: i32, %arg1: memref<8x128xf32, #tpu.memory_space<vmem>>, %arg2: memref<128x256xf32, #tpu.memory_space<vmem>>, %arg3: memref<1x256xf32, #tpu.memory_space<vmem>>, %arg4: memref<8x8x32xf32, #tpu.memory_space<vmem>>) attributes {dimension_semantics = [#tpu.dimension_semantics<parallel>], iteration_bounds = array<i64: 2>, scalar_prefetch = 0 : i64, scratch_operands = 0 : i64, tpu.core_type = #tpu.core_type<tc>, window_params = [{transform_indices = @transform_0, window_bounds = array<i64: 8, 128>}, {pipeline_mode = #tpu.pipeline_mode<synchronous>, transform_indices = @transform_1, window_bounds = array<i64: 128, 256>}, {pipeline_mode = #tpu.pipeline_mode<synchronous>, transform_indices = @transform_2, window_bounds = array<i64: 1, 256>}, {transform_indices = @transform_3, window_bounds = array<i64: 8, 8, 32>}]} {
    %c0_i32 = arith.constant 0 : i32
    %c8_i32 = arith.constant 8 : i32
    %0 = arith.muli %c0_i32, %c8_i32 : i32
    %1 = tpu.assume_multiple %0, 8 : i32
    %2 = arith.index_cast %1 : i32 to index
    %c0 = arith.constant 0 : index
    %3 = vector.load %arg1[%2, %c0] : memref<8x128xf32, #tpu.memory_space<vmem>>, vector<8x128xf32>
    %cst = arith.constant dense<0.000000e+00> : vector<8xf32>
    %4 = vector.multi_reduction <add>, %3, %cst [1] : vector<8x128xf32> to vector<8xf32>
    %5 = vector.shape_cast %4 : vector<8xf32> to vector<8x1xf32>
    %cst_0 = arith.constant 1.280000e+02 : f32
    %6 = vector.broadcast %cst_0 : f32 to vector<8x1xf32>
    %7 = arith.divf %5, %6 : vector<8x1xf32>
    %8 = vector.broadcast %7 : vector<8x1xf32> to vector<8x128xf32>
    %9 = arith.subf %3, %8 : vector<8x128xf32>
    %10 = arith.mulf %9, %9 : vector<8x128xf32>
    %cst_1 = arith.constant dense<0.000000e+00> : vector<8xf32>
    %11 = vector.multi_reduction <add>, %10, %cst_1 [1] : vector<8x128xf32> to vector<8xf32>
    %12 = vector.shape_cast %11 : vector<8xf32> to vector<8x1xf32>
    %cst_2 = arith.constant 1.280000e+02 : f32
    %13 = vector.broadcast %cst_2 : f32 to vector<8x1xf32>
    %14 = arith.divf %12, %13 : vector<8x1xf32>
    %cst_3 = arith.constant 9.99999974E-6 : f32
    %15 = vector.broadcast %cst_3 : f32 to vector<8x1xf32>
    %16 = arith.addf %14, %15 : vector<8x1xf32>
    %17 = math.rsqrt %16 : vector<8x1xf32>
    %18 = vector.broadcast %17 : vector<8x1xf32> to vector<8x128xf32>
    %19 = arith.mulf %9, %18 : vector<8x128xf32>
    %c0_4 = arith.constant 0 : index
    %c0_5 = arith.constant 0 : index
    %20 = vector.load %arg2[%c0_4, %c0_5] : memref<128x256xf32, #tpu.memory_space<vmem>>, vector<128x256xf32>
    %cst_6 = arith.constant dense<0.000000e+00> : vector<8x256xf32>
    %21 = tpu.matmul %19, %20, %cst_6 {dimension_numbers = #tpu.dot_dimension_numbers<[1], [0], [0], [1], [0, 0, 1, 1], [], []>} : vector<8x128xf32>, vector<128x256xf32>, vector<8x256xf32> -> vector<8x256xf32>
    %c0_7 = arith.constant 0 : index
    %c0_8 = arith.constant 0 : index
    %22 = vector.load %arg3[%c0_7, %c0_8] : memref<1x256xf32, #tpu.memory_space<vmem>>, vector<1x256xf32>
    %23 = vector.broadcast %22 : vector<1x256xf32> to vector<8x256xf32>
    %24 = arith.addf %21, %23 : vector<8x256xf32>
    %cst_9 = arith.constant 0.000000e+00 : f32
    %25 = vector.broadcast %cst_9 : f32 to vector<8x256xf32>
    %26 = arith.cmpf oge, %24, %25 : vector<8x256xf32>
    %cst_10 = arith.constant 0.00999999977 : f32
    %27 = vector.broadcast %cst_10 : f32 to vector<8x256xf32>
    %28 = arith.mulf %27, %24 : vector<8x256xf32>
    %29 = arith.select %26, %24, %28 : vector<8x256xi1>, vector<8x256xf32>
    %30 = vector.extract_strided_slice %29 {offsets = [0, 0], sizes = [8, 32], strides = [1, 1]} : vector<8x256xf32> to vector<8x32xf32>
    %c0_11 = arith.constant 0 : index
    %31 = arith.index_cast %1 : i32 to index
    %c0_12 = arith.constant 0 : index
    %32 = vector.load %arg4[%c0_11, %31, %c0_12] : memref<8x8x32xf32, #tpu.memory_space<vmem>>, vector<1x8x32xf32>
    %33 = vector.shape_cast %32 : vector<1x8x32xf32> to vector<8x32xf32>
    %34 = vector.shape_cast %30 : vector<8x32xf32> to vector<1x8x32xf32>
    tpu.vector_store %arg4[%c0_11, %31, %c0_12], %34 {strides = array<i32>} : memref<8x8x32xf32, #tpu.memory_space<vmem>>, vector<1x8x32xf32>,
    %35 = vector.extract_strided_slice %29 {offsets = [0, 32], sizes = [8, 32], strides = [1, 1]} : vector<8x256xf32> to vector<8x32xf32>
    %c1 = arith.constant 1 : index
    %36 = arith.index_cast %1 : i32 to index
    %c0_13 = arith.constant 0 : index
    %37 = vector.load %arg4[%c1, %36, %c0_13] : memref<8x8x32xf32, #tpu.memory_space<vmem>>, vector<1x8x32xf32>
    %38 = vector.shape_cast %37 : vector<1x8x32xf32> to vector<8x32xf32>
    %39 = vector.shape_cast %35 : vector<8x32xf32> to vector<1x8x32xf32>
    tpu.vector_store %arg4[%c1, %36, %c0_13], %39 {strides = array<i32>} : memref<8x8x32xf32, #tpu.memory_space<vmem>>, vector<1x8x32xf32>,
    %40 = vector.extract_strided_slice %29 {offsets = [0, 64], sizes = [8, 32], strides = [1, 1]} : vector<8x256xf32> to vector<8x32xf32>
    %c2 = arith.constant 2 : index
    %41 = arith.index_cast %1 : i32 to index
    %c0_14 = arith.constant 0 : index
    %42 = vector.load %arg4[%c2, %41, %c0_14] : memref<8x8x32xf32, #tpu.memory_space<vmem>>, vector<1x8x32xf32>
    %43 = vector.shape_cast %42 : vector<1x8x32xf32> to vector<8x32xf32>
    %44 = vector.shape_cast %40 : vector<8x32xf32> to vector<1x8x32xf32>
    tpu.vector_store %arg4[%c2, %41, %c0_14], %44 {strides = array<i32>} : memref<8x8x32xf32, #tpu.memory_space<vmem>>, vector<1x8x32xf32>,
    %45 = vector.extract_strided_slice %29 {offsets = [0, 96], sizes = [8, 32], strides = [1, 1]} : vector<8x256xf32> to vector<8x32xf32>
    %c3 = arith.constant 3 : index
    %46 = arith.index_cast %1 : i32 to index
    %c0_15 = arith.constant 0 : index
    %47 = vector.load %arg4[%c3, %46, %c0_15] : memref<8x8x32xf32, #tpu.memory_space<vmem>>, vector<1x8x32xf32>
    %48 = vector.shape_cast %47 : vector<1x8x32xf32> to vector<8x32xf32>
    %49 = vector.shape_cast %45 : vector<8x32xf32> to vector<1x8x32xf32>
    tpu.vector_store %arg4[%c3, %46, %c0_15], %49 {strides = array<i32>} : memref<8x8x32xf32, #tpu.memory_space<vmem>>, vector<1x8x32xf32>,
    %50 = vector.extract_strided_slice %29 {offsets = [0, 128], sizes = [8, 32], strides = [1, 1]} : vector<8x256xf32> to vector<8x32xf32>
    %c4 = arith.constant 4 : index
    %51 = arith.index_cast %1 : i32 to index
    %c0_16 = arith.constant 0 : index
    %52 = vector.load %arg4[%c4, %51, %c0_16] : memref<8x8x32xf32, #tpu.memory_space<vmem>>, vector<1x8x32xf32>
    %53 = vector.shape_cast %52 : vector<1x8x32xf32> to vector<8x32xf32>
    %54 = vector.shape_cast %50 : vector<8x32xf32> to vector<1x8x32xf32>
    tpu.vector_store %arg4[%c4, %51, %c0_16], %54 {strides = array<i32>} : memref<8x8x32xf32, #tpu.memory_space<vmem>>, vector<1x8x32xf32>,
    %55 = vector.extract_strided_slice %29 {offsets = [0, 160], sizes = [8, 32], strides = [1, 1]} : vector<8x256xf32> to vector<8x32xf32>
    %c5 = arith.constant 5 : index
    %56 = arith.index_cast %1 : i32 to index
    %c0_17 = arith.constant 0 : index
    %57 = vector.load %arg4[%c5, %56, %c0_17] : memref<8x8x32xf32, #tpu.memory_space<vmem>>, vector<1x8x32xf32>
    %58 = vector.shape_cast %57 : vector<1x8x32xf32> to vector<8x32xf32>
    %59 = vector.shape_cast %55 : vector<8x32xf32> to vector<1x8x32xf32>
    tpu.vector_store %arg4[%c5, %56, %c0_17], %59 {strides = array<i32>} : memref<8x8x32xf32, #tpu.memory_space<vmem>>, vector<1x8x32xf32>,
    %60 = vector.extract_strided_slice %29 {offsets = [0, 192], sizes = [8, 32], strides = [1, 1]} : vector<8x256xf32> to vector<8x32xf32>
    %c6 = arith.constant 6 : index
    %61 = arith.index_cast %1 : i32 to index
    %c0_18 = arith.constant 0 : index
    %62 = vector.load %arg4[%c6, %61, %c0_18] : memref<8x8x32xf32, #tpu.memory_space<vmem>>, vector<1x8x32xf32>
    %63 = vector.shape_cast %62 : vector<1x8x32xf32> to vector<8x32xf32>
    %64 = vector.shape_cast %60 : vector<8x32xf32> to vector<1x8x32xf32>
    tpu.vector_store %arg4[%c6, %61, %c0_18], %64 {strides = array<i32>} : memref<8x8x32xf32, #tpu.memory_space<vmem>>, vector<1x8x32xf32>,
    %65 = vector.extract_strided_slice %29 {offsets = [0, 224], sizes = [8, 32], strides = [1, 1]} : vector<8x256xf32> to vector<8x32xf32>
    %c7 = arith.constant 7 : index
    %66 = arith.index_cast %1 : i32 to index
    %c0_19 = arith.constant 0 : index
    %67 = vector.load %arg4[%c7, %66, %c0_19] : memref<8x8x32xf32, #tpu.memory_space<vmem>>, vector<1x8x32xf32>
    %68 = vector.shape_cast %67 : vector<1x8x32xf32> to vector<8x32xf32>
    %69 = vector.shape_cast %65 : vector<8x32xf32> to vector<1x8x32xf32>
    tpu.vector_store %arg4[%c7, %66, %c0_19], %69 {strides = array<i32>} : memref<8x8x32xf32, #tpu.memory_space<vmem>>, vector<1x8x32xf32>,
    %c1_i32 = arith.constant 1 : i32
    return
  }
  func.func @transform_0(%arg0: i32) -> (i32, i32) {
    %c0_i32 = arith.constant 0 : i32
    %c0_i32_0 = arith.constant 0 : i32
    return %arg0, %c0_i32 : i32, i32
  }
  func.func @transform_1(%arg0: i32) -> (i32, i32) {
    %c0_i32 = arith.constant 0 : i32
    %c0_i32_0 = arith.constant 0 : i32
    %c0_i32_1 = arith.constant 0 : i32
    return %c0_i32, %c0_i32_0 : i32, i32
  }
  func.func @transform_2(%arg0: i32) -> (i32, i32) {
    %c0_i32 = arith.constant 0 : i32
    %c0_i32_0 = arith.constant 0 : i32
    %c0_i32_1 = arith.constant 0 : i32
    return %c0_i32, %c0_i32_0 : i32, i32
  }
  func.func @transform_3(%arg0: i32) -> (i32, i32, i32) {
    %c0_i32 = arith.constant 0 : i32
    %c0_i32_0 = arith.constant 0 : i32
    %c0_i32_1 = arith.constant 0 : i32
    return %c0_i32, %arg0, %c0_i32_0 : i32, i32, i32
  }
}

</mosaic_0001>

<llo_original>
// kernel: mul.5
$region0: #{mul.5}
  %s0 = inlined_call_operand.vmem [shape: f32[8,16], index: 0, kind: input, shape index: {}]
  %s1 = inlined_call_operand.vmem [shape: f32[128], index: 1, kind: output, shape index: {}]
  $region1: #{mul.5} parent=0
    #allocation0 [shape = 'u8[4096]{0}', space=vmem, size = 0x1000, scoped, tag = 'scoped mem for output reshape']
    %v2 = vld [vmem:[%s0] sm:$0x1]
    %vm3 = vcmask 130048
    %4 = vst.msk [vmem:[#allocation0] sm:$0x1] %vm3, %v2
    %s5 = scalar_lea.vmem %s0, 7
    %v6 = vld [vmem:[%s5] sm:$0x1]
    %7 = vrot.lane.b32.xlu0 %v6, 112
    %v8 = vpop.permute.xlu0 %7
    %vm9 = vcmask 1048448
    %10 = vst.msk [vmem:[#allocation0] sm:$0x1] %vm9, %v8
    %s11 = scalar_lea.vmem %s0, 6
    %v12 = vld [vmem:[%s11] sm:$0x1]
    %13 = vrot.lane.b32.xlu0 %v12, 96
    %v14 = vpop.permute.xlu0 %13
    %vm15 = vcmask 917248
    %16 = vst.msk [vmem:[#allocation0] sm:$0x1] %vm15, %v14
    %s17 = scalar_lea.vmem %s0, 5
    %v18 = vld [vmem:[%s17] sm:$0x1]
    %19 = vrot.lane.b32.xlu0 %v18, 80
    %v20 = vpop.permute.xlu0 %19
    %vm21 = vcmask 786048
    %22 = vst.msk [vmem:[#allocation0] sm:$0x1] %vm21, %v20
    %s23 = scalar_lea.vmem %s0, 4
    %v24 = vld [vmem:[%s23] sm:$0x1]
    %25 = vrot.lane.b32.xlu0 %v24, 64
    %v26 = vpop.permute.xlu0 %25
    %vm27 = vcmask 654848
    %28 = vst.msk [vmem:[#allocation0] sm:$0x1] %vm27, %v26
    %s29 = scalar_lea.vmem %s0, 3
    %v30 = vld [vmem:[%s29] sm:$0x1]
    %31 = vrot.lane.b32.xlu0 %v30, 48
    %v32 = vpop.permute.xlu0 %31
    %vm33 = vcmask 523648
    %34 = vst.msk [vmem:[#allocation0] sm:$0x1] %vm33, %v32
    %s35 = scalar_lea.vmem %s0, 2
    %v36 = vld [vmem:[%s35] sm:$0x1]
    %37 = vrot.lane.b32.xlu0 %v36, 32
    %v38 = vpop.permute.xlu0 %37
    %vm39 = vcmask 392448
    %40 = vst.msk [vmem:[#allocation0] sm:$0x1] %vm39, %v38
    %s41 = scalar_lea.vmem %s0, 1
    %v42 = vld [vmem:[%s41] sm:$0x1]
    %43 = vrot.lane.b32.xlu0 %v42, 16
    %v44 = vpop.permute.xlu0 %43
    %vm45 = vcmask 261248
    %46 = vst.msk [vmem:[#allocation0] sm:$0x1] %vm45, %v44
    %s48 = sshllo.u32 0, 1
    %v50 = vld [vmem:[#allocation0] sm:%s48]
    %s51 = sshllo.u32 0, 1
    %52 = vst [vmem:[%s1] sm:%s51] %v50

// kernel: state_embedding.1
$region0: #{state_embedding.1}
  #allocation0 [shape = 'u32[]', space=smem, size = 0x4, offset = 0x4, fixed_abs, tag = 'smem constant byte address 0x4 - core index']
  #allocation1 [shape = 'u32[144,128]{1,0:T(1,128)}', space=vmem, size = 0x12000, scoped, tag = 'internal scratch']
  %s0 = inlined_call_operand.vmem [shape: f32[16,128], index: 0, kind: input, shape index: {}]
  %s1 = inlined_call_operand.vmem [shape: f32[128,256], index: 1, kind: input, shape index: {}]
  %s2 = inlined_call_operand.vmem [shape: f32[1,256], index: 2, kind: input, shape index: {}]
  %s3 = inlined_call_operand.vmem [shape: f32[8,16,32], index: 3, kind: output, shape index: {}]
  %s4 = sld [smem:[#allocation0]]
  $region79: #{state_embedding.1} parent=0
    _
  %s6 = ssub.s32 1, %s4
  %s7 = scalar_select 0, %s6, %s4
  $region1: #{state_embedding.1} parent=0
    #allocation2 [shape = 'u8[65536]{0}', space=vmem, size = 0x10000, scoped, tag = 'output window, operand 0']
    loop: start=0, step=1, limit=4
    $region2: #{state_embedding.1} parent=1 // loop_pre_header
      _
    $region3: #{state_embedding.1} parent=1 // loop_header
      %s9 = sphi 0, %s13
      %p10 = scmp.ge.s32.totalorder %s9, 4
      %s19 = sphi 0, %s21
      %s22 = sphi 0, %s19
      %s23 = sphi 0, %s22
      %s39 = sphi 0, %s23
      %s43 = sphi 0, %s43
      %s45 = sphi 0, %s43
      %s46 = sphi 0, %s45
      %s60 = sphi 0, %s46
      %s64 = sphi 0, %s64
      %s66 = sphi 0, %s64
      %s67 = sphi 0, %s66
      %s81 = sphi 0, %s67
      %s87 = sphi 0, %s89
      %s90 = sphi 0, %s87
      %s91 = sphi 0, %s90
      %s107 = sphi 0, %s91
    $region4: #{state_embedding.1} parent=1 // loop_header_branch
      %12 = sbr.rel (%p10) target = $region8
    $region5: #{state_embedding.1} parent=1 // loop_body
      %s14 = ssub.s32 %s9, 1
      %s15 = ssub.s32 %s9, 2
      %s16 = sadd.s32 %s9, 1
      %s17 = ssub.s32 %s9, %s16
      %p18 = scmp.eq.s32.totalorder %s17, 0
      %s20 = sadd.s32 %s19, 1
      %s21 = scalar_select %p18, %s19, %s20
      %p24 = pneg %p18
      %p25 = scmp.eq.s32.totalorder %s9, 1
      %p26 = por %p24, %p25
      %p27 = scmp.ne.s32.totalorder %s19, %s22
      %p28 = scmp.eq.s32.totalorder %s9, 0
      %p29 = por %p27, %p28
      %p30 = scmp.ne.s32.totalorder %s19, %s22
      %p31 = scmp.eq.s32.totalorder %s14, 1
      %p32 = por %p30, %p31
      %p33 = scmp.ne.s32.totalorder %s22, %s23
      %p34 = scmp.eq.s32.totalorder %s14, 0
      %p35 = por %p33, %p34
      %p36 = scmp.ne.s32.totalorder %s22, %s23
      %p37 = scmp.eq.s32.totalorder %s15, 1
      %p38 = por %p36, %p37
      %p40 = scmp.ne.s32.totalorder %s23, %s39
      %p41 = scmp.eq.s32.totalorder %s15, 0
      %p42 = por %p40, %p41
      %s44 = sadd.s32 %s43, 1
      %p47 = scmp.eq.s32.totalorder %s9, 1
      %p48 = scmp.ne.s32.totalorder %s43, %s45
      %p49 = scmp.eq.s32.totalorder %s9, 0
      %p50 = por %p48, %p49
      %p51 = scmp.ne.s32.totalorder %s43, %s45
      %p52 = scmp.eq.s32.totalorder %s14, 1
      %p53 = por %p51, %p52
      %p54 = scmp.ne.s32.totalorder %s45, %s46
      %p55 = scmp.eq.s32.totalorder %s14, 0
      %p56 = por %p54, %p55
      %p57 = scmp.ne.s32.totalorder %s45, %s46
      %p58 = scmp.eq.s32.totalorder %s15, 1
      %p59 = por %p57, %p58
      %p61 = scmp.ne.s32.totalorder %s46, %s60
      %p62 = scmp.eq.s32.totalorder %s15, 0
      %p63 = por %p61, %p62
      %s65 = sadd.s32 %s64, 1
      %p68 = scmp.eq.s32.totalorder %s9, 1
      %p69 = scmp.ne.s32.totalorder %s64, %s66
      %p70 = scmp.eq.s32.totalorder %s9, 0
      %p71 = por %p69, %p70
      %p72 = scmp.ne.s32.totalorder %s64, %s66
      %p73 = scmp.eq.s32.totalorder %s14, 1
      %p74 = por %p72, %p73
      %p75 = scmp.ne.s32.totalorder %s66, %s67
      %p76 = scmp.eq.s32.totalorder %s14, 0
      %p77 = por %p75, %p76
      %p78 = scmp.ne.s32.totalorder %s66, %s67
      %p79 = scmp.eq.s32.totalorder %s15, 1
      %p80 = por %p78, %p79
      %p82 = scmp.ne.s32.totalorder %s67, %s81
      %p83 = scmp.eq.s32.totalorder %s15, 0
      %p84 = por %p82, %p83
      %s85 = ssub.s32 %s9, %s16
      %p86 = scmp.eq.s32.totalorder %s85, 0
      %s88 = sadd.s32 %s87, 1
      %s89 = scalar_select %p86, %s87, %s88
      %p92 = pneg %p86
      %p93 = scmp.eq.s32.totalorder %s9, 1
      %p94 = por %p92, %p93
      %p95 = scmp.ne.s32.totalorder %s87, %s90
      %p96 = scmp.eq.s32.totalorder %s9, 0
      %p97 = por %p95, %p96
      %p98 = scmp.ne.s32.totalorder %s87, %s90
      %p99 = scmp.eq.s32.totalorder %s14, 1
      %p100 = por %p98, %p99
      %p101 = scmp.ne.s32.totalorder %s90, %s91
      %p102 = scmp.eq.s32.totalorder %s14, 0
      %p103 = por %p101, %p102
      %p104 = scmp.ne.s32.totalorder %s90, %s91
      %p105 = scmp.eq.s32.totalorder %s15, 1
      %p106 = por %p104, %p105
      %p108 = scmp.ne.s32.totalorder %s91, %s107
      %p109 = scmp.eq.s32.totalorder %s15, 0
      %p110 = por %p108, %p109
      %p111 = scmp.le.s32.totalorder 1, %s9
      %p112 = scmp.lt.s32.totalorder %s9, 3
      %p113 = pnand %p111, %p112
      %p114 = pneg %p113
      // Predicated region
      $region9: #{state_embedding.1} parent=5 // pred_check
        _
      $region10: #{state_embedding.1} parent=5 // pred_check_branch
        %116 = sbr.rel (%p113) target = $region12
      $region11: #{state_embedding.1} parent=5 // pred_region
        %s117 = ssub.s32 %s9, 1
        // Predicated region
        $region13: #{state_embedding.1} parent=11 // pred_check
          %p118 = pneg %p56
        $region14: #{state_embedding.1} parent=11 // pred_check_branch
          %120 = sbr.rel (%p118) target = $region16
        $region15: #{state_embedding.1} parent=11 // pred_region
          _
        $region16: #{state_embedding.1} parent=11 // pred_fallthru
          _
        // Predicated region
        $region17: #{state_embedding.1} parent=11 // pred_check
          %p121 = pneg %p77
        $region18: #{state_embedding.1} parent=11 // pred_check_branch
          %123 = sbr.rel (%p121) target = $region20
        $region19: #{state_embedding.1} parent=11 // pred_region
          _
        $region20: #{state_embedding.1} parent=11 // pred_fallthru
          _
      $region12: #{state_embedding.1} parent=5 // pred_fallthru
        _
      %p124 = scmp.lt.s32.totalorder %s9, 2
      // Predicated region
      $region21: #{state_embedding.1} parent=5 // pred_check
        %p125 = pneg %p124
      $region22: #{state_embedding.1} parent=5 // pred_check_branch
        %127 = sbr.rel (%p125) target = $region24
      $region23: #{state_embedding.1} parent=5 // pred_region
        // Predicated region
        $region25: #{state_embedding.1} parent=23 // pred_check
          %p128 = pneg %p29
        $region26: #{state_embedding.1} parent=23 // pred_check_branch
          %130 = sbr.rel (%p128) target = $region28
        $region27: #{state_embedding.1} parent=23 // pred_region
          %p131 = scmp.lt.s32.totalorder %s9, 1
          %s132 = scalar_select %p131, %s9, 1
          %s133 = smul.addr %s132, 8
          %s134 = scalar_lea.vmem %s0, %s133
        $region28: #{state_embedding.1} parent=23 // pred_fallthru
          _
      $region24: #{state_embedding.1} parent=5 // pred_fallthru
        _
      %p135 = scmp.le.s32.totalorder 1, %s9
      %p136 = scmp.lt.s32.totalorder %s9, 3
      %p137 = pnand %p135, %p136
      %p138 = pneg %p137
      // Predicated region
      $region29: #{state_embedding.1} parent=5 // pred_check
        _
      $region30: #{state_embedding.1} parent=5 // pred_check_branch
        %140 = sbr.rel (%p137) target = $region32
      $region31: #{state_embedding.1} parent=5 // pred_region
        %s141 = ssub.s32 %s9, 1
        %p142 = scmp.lt.s32.totalorder %s14, 1
        %s143 = scalar_select %p142, %s14, 1
        %s144 = smul.addr %s143, 8
        %s145 = scalar_lea.vmem %s0, %s144
        %p146 = pneg %p35
        %p147 = pneg %p32
        %p148 = pneg %p56
        %p149 = pneg %p53
        %p150 = pneg %p77
        %p151 = pneg %p74
        %p152 = pneg %p103
        %p153 = pneg %p100
        %s154 = sand.u32 %s90, 1
        %s155 = sand.u32 %s90, 1
        %s156 = smul.addr %s155, 64
        %s157 = scalar_lea.vmem [#allocation2], %s156
        %p158 = scmp.lt.s32.totalorder %s14, 1
        %s159 = scalar_select %p158, %s14, 1
        %s160 = smul.addr %s159, 8
        %s161 = scalar_lea.vmem %s0, %s160
        %v162 = vld [vmem:[%s161] sm:$0xff]
        %163 = vadd.xlane.f32.xlu0 %v162
        %v164 = vpop.xlane.xlu0 %163
        %v165 = vrcp.pop 128.0
        %v166 = vmul.f32 %v164, %v165
        %v167 = vsub.f32 %v162, %v166
        %v168 = vmul.f32 %v167, %v167
        %169 = vadd.xlane.f32.xlu0 %v168
        %v170 = vpop.xlane.xlu0 %169
        %v171 = vmul.f32 %v170, %v165
        %v172 = vadd.f32 %v171, 1e-05
        %v173 = vrsqrt.pop %v172
        %v174 = vmul.f32 %v167, %v173
        %v175 = vld [vmem:[%s1] sm:$0xff]
        %v176 = vld [vmem:[%s1 + $0x8] sm:$0xff]
        %v177 = vld [vmem:[%s1 + $0x10] sm:$0xff]
        %v178 = vld [vmem:[%s1 + $0x18] sm:$0xff]
        %v179 = vld [vmem:[%s1 + $0x20] sm:$0xff]
        %v180 = vld [vmem:[%s1 + $0x28] sm:$0xff]
        %v181 = vld [vmem:[%s1 + $0x30] sm:$0xff]
        %v182 = vld [vmem:[%s1 + $0x38] sm:$0xff]
        %v183 = vld [vmem:[%s1 + $0x40] sm:$0xff]
        %v184 = vld [vmem:[%s1 + $0x48] sm:$0xff]
        %v185 = vld [vmem:[%s1 + $0x50] sm:$0xff]
        %v186 = vld [vmem:[%s1 + $0x58] sm:$0xff]
        %v187 = vld [vmem:[%s1 + $0x60] sm:$0xff]
        %v188 = vld [vmem:[%s1 + $0x68] sm:$0xff]
        %v189 = vld [vmem:[%s1 + $0x70] sm:$0xff]
        %v190 = vld [vmem:[%s1 + $0x78] sm:$0xff]
        %v191 = vld [vmem:[%s1 + $0x80] sm:$0xff]
        %v192 = vld [vmem:[%s1 + $0x88] sm:$0xff]
        %v193 = vld [vmem:[%s1 + $0x90] sm:$0xff]
        %v194 = vld [vmem:[%s1 + $0x98] sm:$0xff]
        %v195 = vld [vmem:[%s1 + $0xa0] sm:$0xff]
        %v196 = vld [vmem:[%s1 + $0xa8] sm:$0xff]
        %v197 = vld [vmem:[%s1 + $0xb0] sm:$0xff]
        %v198 = vld [vmem:[%s1 + $0xb8] sm:$0xff]
        %v199 = vld [vmem:[%s1 + $0xc0] sm:$0xff]
        %v200 = vld [vmem:[%s1 + $0xc8] sm:$0xff]
        %v201 = vld [vmem:[%s1 + $0xd0] sm:$0xff]
        %v202 = vld [vmem:[%s1 + $0xd8] sm:$0xff]
        %v203 = vld [vmem:[%s1 + $0xe0] sm:$0xff]
        %v204 = vld [vmem:[%s1 + $0xe8] sm:$0xff]
        %v205 = vld [vmem:[%s1 + $0xf0] sm:$0xff]
        %v206 = vld [vmem:[%s1 + $0xf8] sm:$0xff]
        %v207 = vld [vmem:[%s2] sm:$0x3]
        %v209 = vlaneseq
        %v210 = vshrl.u32 %v209, 7
        %v211 = vsub.s32 0, %v210
        %v212 = vrot.slane %v207, %v211
        %v213 = vlaneseq
        %v214 = vshrl.u32 %v213, 7
        %v215 = vsub.s32 1, %v214
        %v216 = vrot.slane %v207, %v215
        %219 = vmatprep.subr.mxu0 %v176
        %220 = vmatpush1.msra.mxu0 %v175
        %221 = vmatprep.subr.mxu0 %v178
        %222 = vmatpush1.msra.mxu0 %v177
        %223 = vmatprep.subr.mxu0 %v180
        %224 = vmatpush1.msra.mxu0 %v179
        %225 = vmatprep.subr.mxu0 %v182
        %226 = vmatpush1.msra.mxu0 %v181
        %227 = vmatprep.subr.mxu0 %v184
        %228 = vmatpush1.msra.mxu0 %v183
        %229 = vmatprep.subr.mxu0 %v186
        %230 = vmatpush1.msra.mxu0 %v185
        %231 = vmatprep.subr.mxu0 %v188
        %232 = vmatpush1.msra.mxu0 %v187
        %233 = vmatprep.subr.mxu0 %v190
        %234 = vmatpush1.msra.mxu0 %v189
        %235 = vmatprep.subr.mxu0 %v192
        %236 = vmatpush1.msra.mxu0 %v191
        %237 = vmatprep.subr.mxu0 %v194
        %238 = vmatpush1.msra.mxu0 %v193
        %239 = vmatprep.subr.mxu0 %v196
        %240 = vmatpush1.msra.mxu0 %v195
        %241 = vmatprep.subr.mxu0 %v198
        %242 = vmatpush1.msra.mxu0 %v197
        %243 = vmatprep.subr.mxu0 %v200
        %244 = vmatpush1.msra.mxu0 %v199
        %245 = vmatprep.subr.mxu0 %v202
        %246 = vmatpush1.msra.mxu0 %v201
        %247 = vmatprep.subr.mxu0 %v204
        %248 = vmatpush1.msra.mxu0 %v203
        %249 = vmatprep.subr.mxu0 %v206
        %250 = vmatpush1.msra.mxu0 %v205
        %251 = vmatprep.subr.mxu0 0.0
        %252 = vmatpush1.msra.mxu0 0.0
        %253 = vmatprep.subr.mxu0 0.0
        %254 = vmatpush1.msra.mxu0 0.0
        %255 = vmatprep.subr.mxu0 0.0
        %256 = vmatpush1.msra.mxu0 0.0
        %257 = vmatprep.subr.mxu0 0.0
        %258 = vmatpush1.msra.mxu0 0.0
        %259 = vmatprep.subr.mxu0 0.0
        %260 = vmatpush1.msra.mxu0 0.0
        %261 = vmatprep.subr.mxu0 0.0
        %262 = vmatpush1.msra.mxu0 0.0
        %263 = vmatprep.subr.mxu0 0.0
        %264 = vmatpush1.msra.mxu0 0.0
        %265 = vmatprep.subr.mxu0 0.0
        %266 = vmatpush1.msra.mxu0 0.0
        %267 = vmatprep.subr.mxu0 0.0
        %268 = vmatpush1.msra.mxu0 0.0
        %269 = vmatprep.subr.mxu0 0.0
        %270 = vmatpush1.msra.mxu0 0.0
        %271 = vmatprep.subr.mxu0 0.0
        %272 = vmatpush1.msra.mxu0 0.0
        %273 = vmatprep.subr.mxu0 0.0
        %274 = vmatpush1.msra.mxu0 0.0
        %275 = vmatprep.subr.mxu0 0.0
        %276 = vmatpush1.msra.mxu0 0.0
        %277 = vmatprep.subr.mxu0 0.0
        %278 = vmatpush1.msra.mxu0 0.0
        %279 = vmatprep.subr.mxu0 0.0
        %280 = vmatpush1.msra.mxu0 0.0
        %281 = vmatprep.subr.mxu0 0.0
        %282 = vmatpush1.msra.mxu0 0.0
        %283 = vmatprep.mubr.f32.mxu0 0.0
        %284 = vmatmul.mubr.f32.gmra.mrb[0].mxu0 %v174
        %v285 = vpop.f32.mrb[0].mxu0
        %v286 = vadd.f32 %v212, %v285
        %v287 = vpop.f32.mrb[0].mxu0
        %v288 = vadd.f32 %v216, %v287
        %289 = vdwg.mxu0
        %vm290 = vcmp.ge.f32.partialorder %v286, 0.0
        %vm291 = vcmp.ge.f32.partialorder %v288, 0.0
        %v292 = vmul.f32 %v286, 0.01
        %v293 = vmul.f32 %v288, 0.01
        %v294 = vsel %vm290, %v286, %v292
        %v295 = vsel %vm291, %v288, %v293
        %vm296 = vcmask 261120
        %297 = vst.msk [vmem:[%s157] sm:$0xff] %vm296, %v294
        %299 = vrot.lane.b32.xlu0 %v294, 96
        %v300 = vpop.permute.xlu0 %299
        %s302 = sadd.s32 0, 8
        %s303 = scalar_lea.vmem %s157, %s302 [#allocation2]
        %304 = vst.msk [vmem:[%s303] sm:$0xff] %vm296, %v300
        %305 = vrot.lane.b32.xlu0 %v294, 64
        %v306 = vpop.permute.xlu0 %305
        %s308 = sadd.s32 0, 16
        %s309 = scalar_lea.vmem %s157, %s308 [#allocation2]
        %310 = vst.msk [vmem:[%s309] sm:$0xff] %vm296, %v306
        %311 = vrot.lane.b32.xlu0 %v294, 32
        %v312 = vpop.permute.xlu0 %311
        %s314 = sadd.s32 0, 24
        %s315 = scalar_lea.vmem %s157, %s314 [#allocation2]
        %316 = vst.msk [vmem:[%s315] sm:$0xff] %vm296, %v312
        %s317 = sadd.s32 0, 32
        %s318 = scalar_lea.vmem %s157, %s317 [#allocation2]
        %319 = vst.msk [vmem:[%s318] sm:$0xff] %vm296, %v295
        %321 = vrot.lane.b32.xlu0 %v295, 96
        %v322 = vpop.permute.xlu0 %321
        %s324 = sadd.s32 0, 40
        %s325 = scalar_lea.vmem %s157, %s324 [#allocation2]
        %326 = vst.msk [vmem:[%s325] sm:$0xff] %vm296, %v322
        %327 = vrot.lane.b32.xlu0 %v295, 64
        %v328 = vpop.permute.xlu0 %327
        %s330 = sadd.s32 0, 48
        %s331 = scalar_lea.vmem %s157, %s330 [#allocation2]
        %332 = vst.msk [vmem:[%s331] sm:$0xff] %vm296, %v328
        %333 = vrot.lane.b32.xlu0 %v295, 32
        %v334 = vpop.permute.xlu0 %333
        %s336 = sadd.s32 0, 56
        %s337 = scalar_lea.vmem %s157, %s336 [#allocation2]
        %338 = vst.msk [vmem:[%s337] sm:$0xff] %vm296, %v334
        %s339 = sand.u32 %s90, 1
        %s340 = sand.u32 %s90, 1
        %s341 = smul.addr %s340, 64
        %s342 = scalar_lea.vmem [#allocation2], %s341
        // Predicated region
        $region33: #{state_embedding.1} parent=31 // pred_check
          %p343 = pneg %p100
        $region34: #{state_embedding.1} parent=31 // pred_check_branch
          %345 = sbr.rel (%p343) target = $region36
        $region35: #{state_embedding.1} parent=31 // pred_region
          %s346 = smul.addr %s14, 8
          %s347 = scalar_lea.vmem %s3, %s346
          // Predicated region
          $region37: #{state_embedding.1} parent=35 // pred_check
            _
          $region38: #{state_embedding.1} parent=35 // pred_check_branch
            %349 = sbr.rel (0) target = $region40
          $region39: #{state_embedding.1} parent=35 // pred_region
            // Predicated region
            $region41: #{state_embedding.1} parent=39 // pred_check
              _
            $region42: #{state_embedding.1} parent=39 // pred_check_branch
              %351 = sbr.rel (0) target = $region44
            $region43: #{state_embedding.1} parent=39 // pred_region
              // Predicated region
              $region56: #{state_embedding.1} parent=43 // pred_check
                _
              $region57: #{state_embedding.1} parent=43 // pred_check_branch
                %380 = sbr.rel (0) target = $region59
              $region58: #{state_embedding.1} parent=43 // pred_region
                loop: start=0, step=1, limit=1
                $region60: #{state_embedding.1} parent=58 // loop_pre_header
                  _
                $region61: #{state_embedding.1} parent=58 // loop_header
                  %s382 = sphi 0, %s386
                  %p383 = scmp.ge.s32.totalorder %s382, 1
                  %s387 = sphi %s342, %s342
                  %s388 = sphi %s347, %s347
                $region62: #{state_embedding.1} parent=58 // loop_header_branch
                  %385 = sbr.rel (%p383) target = $region66
                $region63: #{state_embedding.1} parent=58 // loop_body
                  %v389 = vld [vmem:[%s387] sm:$0xff]
                  %390 = vst [vmem:[%s388] sm:$0xff] %v389
                  %v391 = vld [vmem:[%s387 + $0x8] sm:$0xff]
                  %392 = vst [vmem:[%s388 + $0x10] sm:$0xff] %v391
                  %v393 = vld [vmem:[%s387 + $0x10] sm:$0xff]
                  %394 = vst [vmem:[%s388 + $0x20] sm:$0xff] %v393
                  %v395 = vld [vmem:[%s387 + $0x18] sm:$0xff]
                  %396 = vst [vmem:[%s388 + $0x30] sm:$0xff] %v395
                  %v397 = vld [vmem:[%s387 + $0x20] sm:$0xff]
                  %398 = vst [vmem:[%s388 + $0x40] sm:$0xff] %v397
                  %v399 = vld [vmem:[%s387 + $0x28] sm:$0xff]
                  %400 = vst [vmem:[%s388 + $0x50] sm:$0xff] %v399
                  %v401 = vld [vmem:[%s387 + $0x30] sm:$0xff]
                  %402 = vst [vmem:[%s388 + $0x60] sm:$0xff] %v401
                  %v403 = vld [vmem:[%s387 + $0x38] sm:$0xff]
                  %404 = vst [vmem:[%s388 + $0x70] sm:$0xff] %v403
                $region64: #{state_embedding.1} parent=58 // loop_footer
                  %s386 = sadd.s32 1, %s382
                $region65: #{state_embedding.1} parent=58 // loop_footer_branch
                  %381 = sbr.rel target = $region61
                $region66: #{state_embedding.1} parent=58 // loop_exit
                  _
              $region59: #{state_embedding.1} parent=43 // pred_fallthru
                _
              // Predicated region
              $region67: #{state_embedding.1} parent=43 // pred_check
                _
              $region68: #{state_embedding.1} parent=43 // pred_check_branch
                %406 = sbr.rel target = $region70
              $region69: #{state_embedding.1} parent=43 // pred_region
                _
              $region70: #{state_embedding.1} parent=43 // pred_fallthru
                _
            $region44: #{state_embedding.1} parent=39 // pred_fallthru
              _
            // Predicated region
            $region45: #{state_embedding.1} parent=39 // pred_check
              _
            $region46: #{state_embedding.1} parent=39 // pred_check_branch
              %353 = sbr.rel target = $region48
            $region47: #{state_embedding.1} parent=39 // pred_region
              loop: start=0, step=1, limit=1
              $region49: #{state_embedding.1} parent=47 // loop_pre_header
                _
              $region50: #{state_embedding.1} parent=47 // loop_header
                %s356 = sphi 0, %s360
                %p357 = scmp.ge.s32.totalorder %s356, 1
                %s361 = sphi %s342, %s342
                %s362 = sphi %s347, %s347
              $region51: #{state_embedding.1} parent=47 // loop_header_branch
                %359 = sbr.rel (%p357) target = $region55
              $region52: #{state_embedding.1} parent=47 // loop_body
                %v363 = vld [vmem:[%s361] sm:$0xff]
                %364 = vst [vmem:[%s362] sm:$0xff] %v363
                %v365 = vld [vmem:[%s361 + $0x8] sm:$0xff]
                %366 = vst [vmem:[%s362 + $0x10] sm:$0xff] %v365
                %v367 = vld [vmem:[%s361 + $0x10] sm:$0xff]
                %368 = vst [vmem:[%s362 + $0x20] sm:$0xff] %v367
                %v369 = vld [vmem:[%s361 + $0x18] sm:$0xff]
                %370 = vst [vmem:[%s362 + $0x30] sm:$0xff] %v369
                %v371 = vld [vmem:[%s361 + $0x20] sm:$0xff]
                %372 = vst [vmem:[%s362 + $0x40] sm:$0xff] %v371
                %v373 = vld [vmem:[%s361 + $0x28] sm:$0xff]
                %374 = vst [vmem:[%s362 + $0x50] sm:$0xff] %v373
                %v375 = vld [vmem:[%s361 + $0x30] sm:$0xff]
                %376 = vst [vmem:[%s362 + $0x60] sm:$0xff] %v375
                %v377 = vld [vmem:[%s361 + $0x38] sm:$0xff]
                %378 = vst [vmem:[%s362 + $0x70] sm:$0xff] %v377
              $region53: #{state_embedding.1} parent=47 // loop_footer
                %s360 = sadd.s32 1, %s356
              $region54: #{state_embedding.1} parent=47 // loop_footer_branch
                %355 = sbr.rel target = $region50
              $region55: #{state_embedding.1} parent=47 // loop_exit
                _
            $region48: #{state_embedding.1} parent=39 // pred_fallthru
              _
          $region40: #{state_embedding.1} parent=35 // pred_fallthru
            _
          %407 = vnop
        $region36: #{state_embedding.1} parent=31 // pred_fallthru
          _
      $region32: #{state_embedding.1} parent=5 // pred_fallthru
        _
      %p408 = scmp.le.s32.totalorder 2, %s9
      // Predicated region
      $region71: #{state_embedding.1} parent=5 // pred_check
        %p409 = pneg %p408
      $region72: #{state_embedding.1} parent=5 // pred_check_branch
        %411 = sbr.rel (%p409) target = $region74
      $region73: #{state_embedding.1} parent=5 // pred_region
        %s412 = ssub.s32 %s9, 2
        // Predicated region
        $region75: #{state_embedding.1} parent=73 // pred_check
          %p413 = pneg %p106
        $region76: #{state_embedding.1} parent=73 // pred_check_branch
          %415 = sbr.rel (%p413) target = $region78
        $region77: #{state_embedding.1} parent=73 // pred_region
          %s416 = sand.u32 %s91, 1
          %s417 = sand.u32 %s91, 1
          %s418 = smul.addr %s417, 64
          %s419 = scalar_lea.vmem [#allocation2], %s418
        $region78: #{state_embedding.1} parent=73 // pred_fallthru
          _
      $region74: #{state_embedding.1} parent=5 // pred_fallthru
        _
    $region6: #{state_embedding.1} parent=1 // loop_footer
      %s13 = sadd.s32 1, %s9
    $region7: #{state_embedding.1} parent=1 // loop_footer_branch
      %8 = sbr.rel target = $region3
    $region8: #{state_embedding.1} parent=1 // loop_exit
      _

</llo_original>
